<compile_context>
chip_gen: v5e
topology: v5e:2x2
jax: 0.10.0
libtpu: 0.0.40
codegen_flags: <defaults>
</compile_context>

<pallas_src>
import functools

import jax
import jax.numpy as jnp
from jax import lax
from jax.experimental import pallas as pl
from jax.experimental.pallas import tpu as pltpu


# ----------------------------------------------------------------------------
# Kernel
# ----------------------------------------------------------------------------
def shortnet_kernel(x_ref, w1_ref, b1_ref, w2_ref, b2_ref,
                    w3_ref, b3_ref, w4_ref, b4_ref, out_ref,
                    *, chunk, num_chunks, unroll, mxu_bf16):
    mxu_dtype = jnp.bfloat16 if mxu_bf16 else jnp.float32

    w1 = w1_ref[...].astype(mxu_dtype)       # (H, 2)
    b1 = b1_ref[...]                         # (H, 1)
    w2 = w2_ref[...].astype(mxu_dtype)       # (H, H)
    b2 = b2_ref[...]                         # (H, 1)
    w3 = w3_ref[...].astype(mxu_dtype)       # (1, H)
    b3 = b3_ref[...]                         # (1, 1)
    w4 = w4_ref[...]                         # (1, 2)
    b4 = b4_ref[...]                         # (1, 1)

    def body(c, carry):
        off = pl.multiple_of(c * chunk, 128)
        x = x_ref[:, pl.ds(off, chunk)]      # (2, chunk), lane-dense
        xm = x.astype(mxu_dtype)

        # lin1(x): K=2 contraction on the MXU (frees the VALU slots).
        lin1_x = jnp.dot(w1, xm, preferred_element_type=jnp.float32) + b1
        hid1 = jnp.tanh(lin1_x)              # (H, chunk)

        # hid2 = tanh(lin2(hid1) + lin1(x)): HxH MXU matmul.
        lin2_h1 = jnp.dot(w2, hid1.astype(mxu_dtype),
                          preferred_element_type=jnp.float32)
        hid2 = jnp.tanh(lin2_h1 + b2 + lin1_x)

        # lin3(hid2) + lin3(hid1) fused by linearity; bias counted twice on
        # purpose (matches the PyTorch module exactly).
        lin3 = jnp.dot(w3, (hid1 + hid2).astype(mxu_dtype),
                       preferred_element_type=jnp.float32) + 2.0 * b3

        # lin4(x): single output row, 2 FMAs -- negligible, keep on the VPU.
        lin4_x = w4[:, 0:1] * x[0:1, :] + w4[:, 1:2] * x[1:2, :] + b4

        out_ref[:, pl.ds(off, chunk)] = (
            jax.nn.sigmoid(lin3 + lin4_x).astype(out_ref.dtype))
        return carry

    lax.fori_loop(0, num_chunks, body, 0, unroll=unroll)


# ----------------------------------------------------------------------------
# Tiling helpers
# ----------------------------------------------------------------------------
def _round_up(v, m):
    return -(-v // m) * m


def _divisors(m):
    out = set()
    i = 1
    while i * i <= m:
        if m % i == 0:
            out.add(i)
            out.add(m // i)
        i += 1
    return sorted(out)


def _multi_tensorcore():
    """Best-effort detection of multi-TensorCore chips (v7x)."""
    try:
        kind = jax.devices()[0].device_kind.lower()
        return ("v7" in kind) or ("7x" in kind)
    except Exception:
        return False


def _pick_tile(n, max_tile, prefer_multi_step):
    """Batch tile = 128-multiple divisor of round_up(n, 128), as large as
    possible <= max_tile (padding waste < 128 elements).  On multi-TC parts
    keep >= 2 (preferably even) grid steps so both cores get work."""
    n_pad = max(_round_up(n, 128), 128)
    m = n_pad // 128                              # size in 128-lane units
    max_units = max(1, max_tile // 128)
    cand = [d for d in _divisors(m) if d <= max_units]
    tile_units = max(cand)
    if prefer_multi_step and m >= 2 and m // tile_units < 2:
        multi = [d for d in cand if m // d >= 2]
        if multi:
            even = [d for d in multi if (m // d) % 2 == 0]
            tile_units = max(even) if even else max(multi)
    return tile_units * 128, n_pad


def _pick_chunk(tile_n, hid):
    """Strip-mine chunk: keep (hid, chunk) f32 temps roughly vreg-resident."""
    target = max(128, (8192 // max(hid, 1)) // 128 * 128)
    for c in (512, 256, 128):
        if c <= target and tile_n % c == 0:
            return c
    return 128


# ----------------------------------------------------------------------------
# Wrapper
# ----------------------------------------------------------------------------
def _shortnet_fm(xt, params, max_tile, mxu_bf16):
    """xt: (2, N) feature-major float32.  Returns (1, N) float32."""
    two, n = xt.shape
    assert two == 2
    hid = params["w1"].shape[0]

    tile_n, n_pad = _pick_tile(n, max_tile, _multi_tensorcore())
    if n_pad != n:
        xt = jnp.pad(xt, ((0, 0), (0, n_pad - n)))   # only when N % 128 != 0
    grid = (n_pad // tile_n,)

    chunk = _pick_chunk(tile_n, hid)
    num_chunks = tile_n // chunk
    unroll = num_chunks if num_chunks <= 8 else 8

    def const_spec(shape):
        return pl.BlockSpec(shape, lambda i: (0, 0))

    in_specs = [
        pl.BlockSpec((2, tile_n), lambda i: (0, i)),   # x (feature-major)
        const_spec((hid, 2)),                          # w1
        const_spec((hid, 1)),                          # b1
        const_spec((hid, hid)),                        # w2
        const_spec((hid, 1)),                          # b2
        const_spec((1, hid)),                          # w3
        const_spec((1, 1)),                            # b3
        const_spec((1, 2)),                            # w4
        const_spec((1, 1)),                            # b4
    ]
    out_spec = pl.BlockSpec((1, tile_n), lambda i: (0, i))

    param_bytes = sum(int(params[k].size) * 4 for k in params)
    # Pipeline footprint: double-buffered (2+1, tile) f32 I/O + params; the
    # strip-mined intermediates live in vregs, so this is H-independent.
    tile_io_bytes = 3 * tile_n * 4
    vmem_limit = int(min(64 << 20,
                         max(8 << 20, 4 * (2 * tile_io_bytes + 2 * param_bytes))))

    cost = pl.CostEstimate(
        flops=int(2 * n_pad * hid * (hid + 3) + 8 * n_pad),
        transcendentals=int(n_pad * (2 * hid + 1)),
        bytes_accessed=int(12 * n_pad + param_bytes),
    )

    kernel = functools.partial(shortnet_kernel, chunk=chunk,
                               num_chunks=num_chunks, unroll=unroll,
                               mxu_bf16=mxu_bf16)

    out = pl.pallas_call(
        kernel,
        out_shape=jax.ShapeDtypeStruct((1, n_pad), jnp.float32),
        grid_spec=pltpu.PrefetchScalarGridSpec(
            num_scalar_prefetch=0,
            grid=grid,
            in_specs=in_specs,
            out_specs=out_spec,
        ),
        compiler_params=pltpu.CompilerParams(
            dimension_semantics=("parallel",),
            vmem_limit_bytes=vmem_limit),
        cost_estimate=cost,
    )(xt, params["w1"], params["b1"], params["w2"], params["b2"],
      params["w3"], params["b3"], params["w4"], params["b4"])

    if n_pad != n:
        out = out[:, :n]
    return out


@functools.partial(jax.jit, static_argnames=("max_tile", "mxu_bf16"))
def shortnet_forward(x, params, max_tile=8192, mxu_bf16=False):
    """x: (N, 2) batch-major (PyTorch layout) float32.  Returns (N, 1)."""
    out = _shortnet_fm(x.T, params, max_tile, mxu_bf16)   # cheap 2xN transpose
    return out[0].reshape(-1, 1)


@functools.partial(jax.jit, static_argnames=("max_tile", "mxu_bf16"))
def shortnet_forward_fm(xt, params, max_tile=8192, mxu_bf16=False):
    """Feature-major entry: xt (2, N) in, (1, N) out -- no transpose copy."""
    return _shortnet_fm(xt, params, max_tile, mxu_bf16)


# ----------------------------------------------------------------------------
# Params / reference
# ----------------------------------------------------------------------------
def init_params(key, num_hid):
    """PyTorch nn.Linear-style init (uniform +/- 1/sqrt(fan_in)), stored in the
    native PyTorch (out_features, in_features) layout; biases (out, 1)."""
    def linear(k, fan_in, fan_out):
        kw, kb = jax.random.split(k)
        bound = 1.0 / jnp.sqrt(float(fan_in))
        w = jax.random.uniform(kw, (fan_out, fan_in), jnp.float32, -bound, bound)
        b = jax.random.uniform(kb, (fan_out, 1), jnp.float32, -bound, bound)
        return w, b

    k1, k2, k3, k4 = jax.random.split(key, 4)
    w1, b1 = linear(k1, 2, num_hid)
    w2, b2 = linear(k2, num_hid, num_hid)
    w3, b3 = linear(k3, num_hid, 1)
    w4, b4 = linear(k4, 2, 1)
    return dict(w1=w1, b1=b1, w2=w2, b2=b2, w3=w3, b3=b3, w4=w4, b4=b4)


def shortnet_reference(x, p):
    """Pure-JAX reference mirroring the PyTorch forward exactly (batch-major)."""
    lin1_x = x @ p["w1"].T + p["b1"].T
    hid1 = jnp.tanh(lin1_x)
    hid2 = jnp.tanh(hid1 @ p["w2"].T + p["b2"].T + lin1_x)
    logits = (hid2 @ p["w3"].T + p["b3"].T) \
           + (hid1 @ p["w3"].T + p["b3"].T) \
           + (x @ p["w4"].T + p["b4"].T)
    return jax.nn.sigmoid(logits)


if __name__ == "__main__":
    num_hid = 32
    key = jax.random.PRNGKey(0)
    kx, kp = jax.random.split(key)
    params = init_params(kp, num_hid)

    ok = True
    # 384: lane-aligned fast path (no padding); 200: padded-tail path.
    for batch in (384, 200):
        xb = jax.random.normal(jax.random.fold_in(kx, batch), (batch, 2),
                               jnp.float32)
        out = jax.block_until_ready(shortnet_forward(xb, params))
        ref = shortnet_reference(xb, params)
        ok = ok and (out.shape == (batch, 1))
        ok = ok and bool(jnp.allclose(out, ref, atol=1e-5, rtol=1e-5))
    assert ok, "mismatch vs reference"

    print("KERNEL_OK")
</pallas_src>

<mosaic_0001>
module attributes {stable_mosaic.version = 11 : i64} {
  func.func @shortnet_kernel(%arg0: i32, %arg1: memref<2x384xf32, #tpu.memory_space<vmem>>, %arg2: memref<32x2xf32, #tpu.memory_space<vmem>>, %arg3: memref<32x1xf32, #tpu.memory_space<vmem>>, %arg4: memref<32x32xf32, #tpu.memory_space<vmem>>, %arg5: memref<32x1xf32, #tpu.memory_space<vmem>>, %arg6: memref<1x32xf32, #tpu.memory_space<vmem>>, %arg7: memref<1x1xf32, #tpu.memory_space<vmem>>, %arg8: memref<1x2xf32, #tpu.memory_space<vmem>>, %arg9: memref<1x1xf32, #tpu.memory_space<vmem>>, %arg10: memref<1x384xf32, #tpu.memory_space<vmem>>) attributes {dimension_semantics = [#tpu.dimension_semantics<parallel>], iteration_bounds = array<i64: 1>, scalar_prefetch = 0 : i64, scratch_operands = 0 : i64, tpu.core_type = #tpu.core_type<tc>, window_params = [{transform_indices = @transform_0, window_bounds = array<i64: 2, 384>}, {pipeline_mode = #tpu.pipeline_mode<synchronous>, transform_indices = @transform_1, window_bounds = array<i64: 32, 2>}, {pipeline_mode = #tpu.pipeline_mode<synchronous>, transform_indices = @transform_2, window_bounds = array<i64: 32, 1>}, {pipeline_mode = #tpu.pipeline_mode<synchronous>, transform_indices = @transform_3, window_bounds = array<i64: 32, 32>}, {pipeline_mode = #tpu.pipeline_mode<synchronous>, transform_indices = @transform_4, window_bounds = array<i64: 32, 1>}, {pipeline_mode = #tpu.pipeline_mode<synchronous>, transform_indices = @transform_5, window_bounds = array<i64: 1, 32>}, {pipeline_mode = #tpu.pipeline_mode<synchronous>, transform_indices = @transform_6, window_bounds = array<i64: 1, 1>}, {pipeline_mode = #tpu.pipeline_mode<synchronous>, transform_indices = @transform_7, window_bounds = array<i64: 1, 2>}, {pipeline_mode = #tpu.pipeline_mode<synchronous>, transform_indices = @transform_8, window_bounds = array<i64: 1, 1>}, {transform_indices = @transform_9, window_bounds = array<i64: 1, 384>}]} {
    %c0 = arith.constant 0 : index
    %c0_0 = arith.constant 0 : index
    %0 = vector.load %arg2[%c0, %c0_0] : memref<32x2xf32, #tpu.memory_space<vmem>>, vector<32x2xf32>
    %c0_1 = arith.constant 0 : index
    %c0_2 = arith.constant 0 : index
    %1 = vector.load %arg3[%c0_1, %c0_2] : memref<32x1xf32, #tpu.memory_space<vmem>>, vector<32x1xf32>
    %c0_3 = arith.constant 0 : index
    %c0_4 = arith.constant 0 : index
    %2 = vector.load %arg4[%c0_3, %c0_4] : memref<32x32xf32, #tpu.memory_space<vmem>>, vector<32x32xf32>
    %c0_5 = arith.constant 0 : index
    %c0_6 = arith.constant 0 : index
    %3 = vector.load %arg5[%c0_5, %c0_6] : memref<32x1xf32, #tpu.memory_space<vmem>>, vector<32x1xf32>
    %c0_7 = arith.constant 0 : index
    %c0_8 = arith.constant 0 : index
    %4 = vector.load %arg6[%c0_7, %c0_8] : memref<1x32xf32, #tpu.memory_space<vmem>>, vector<1x32xf32>
    %c0_9 = arith.constant 0 : index
    %c0_10 = arith.constant 0 : index
    %5 = vector.load %arg7[%c0_9, %c0_10] : memref<1x1xf32, #tpu.memory_space<vmem>>, vector<1x1xf32>
    %c0_11 = arith.constant 0 : index
    %c0_12 = arith.constant 0 : index
    %6 = vector.load %arg8[%c0_11, %c0_12] : memref<1x2xf32, #tpu.memory_space<vmem>>, vector<1x2xf32>
    %c0_13 = arith.constant 0 : index
    %c0_14 = arith.constant 0 : index
    %7 = vector.load %arg9[%c0_13, %c0_14] : memref<1x1xf32, #tpu.memory_space<vmem>>, vector<1x1xf32>
    %c0_i32 = arith.constant 0 : i32
    %c128_i32 = arith.constant 128 : i32
    %8 = arith.muli %c0_i32, %c128_i32 : i32
    %9 = tpu.assume_multiple %8, 128 : i32
    %c0_15 = arith.constant 0 : index
    %10 = arith.index_cast %9 : i32 to index
    %11 = vector.load %arg1[%c0_15, %10] : memref<2x384xf32, #tpu.memory_space<vmem>>, vector<2x128xf32>
    %cst = arith.constant dense<0.000000e+00> : vector<32x128xf32>
    %12 = tpu.matmul %0, %11, %cst {dimension_numbers = #tpu.dot_dimension_numbers<[1], [0], [0], [1], [0, 0, 1, 1], [], []>} : vector<32x2xf32>, vector<2x128xf32>, vector<32x128xf32> -> vector<32x128xf32>
    %13 = vector.broadcast %1 : vector<32x1xf32> to vector<32x128xf32>
    %14 = arith.addf %12, %13 : vector<32x128xf32>
    %15 = math.tanh %14 : vector<32x128xf32>
    %cst_16 = arith.constant dense<0.000000e+00> : vector<32x128xf32>
    %16 = tpu.matmul %2, %15, %cst_16 {dimension_numbers = #tpu.dot_dimension_numbers<[1], [0], [0], [1], [0, 0, 1, 1], [], []>} : vector<32x32xf32>, vector<32x128xf32>, vector<32x128xf32> -> vector<32x128xf32>
    %17 = vector.broadcast %3 : vector<32x1xf32> to vector<32x128xf32>
    %18 = arith.addf %16, %17 : vector<32x128xf32>
    %19 = arith.addf %18, %14 : vector<32x128xf32>
    %20 = math.tanh %19 : vector<32x128xf32>
    %21 = arith.addf %15, %20 : vector<32x128xf32>
    %cst_17 = arith.constant dense<0.000000e+00> : vector<1x128xf32>
    %22 = tpu.matmul %4, %21, %cst_17 {dimension_numbers = #tpu.dot_dimension_numbers<[1], [0], [0], [1], [0, 0, 1, 1], [], []>} : vector<1x32xf32>, vector<32x128xf32>, vector<1x128xf32> -> vector<1x128xf32>
    %cst_18 = arith.constant 2.000000e+00 : f32
    %23 = vector.broadcast %cst_18 : f32 to vector<1x1xf32>
    %24 = arith.mulf %23, %5 : vector<1x1xf32>
    %25 = vector.broadcast %24 : vector<1x1xf32> to vector<1x128xf32>
    %26 = arith.addf %22, %25 : vector<1x128xf32>
    %27 = vector.extract_strided_slice %6 {offsets = [0, 0], sizes = [1, 1], strides = [1, 1]} : vector<1x2xf32> to vector<1x1xf32>
    %28 = vector.extract_strided_slice %11 {offsets = [0, 0], sizes = [1, 128], strides = [1, 1]} : vector<2x128xf32> to vector<1x128xf32>
    %29 = vector.broadcast %27 : vector<1x1xf32> to vector<1x128xf32>
    %30 = arith.mulf %29, %28 : vector<1x128xf32>
    %31 = vector.extract_strided_slice %6 {offsets = [0, 1], sizes = [1, 1], strides = [1, 1]} : vector<1x2xf32> to vector<1x1xf32>
    %32 = vector.extract_strided_slice %11 {offsets = [1, 0], sizes = [1, 128], strides = [1, 1]} : vector<2x128xf32> to vector<1x128xf32>
    %33 = vector.broadcast %31 : vector<1x1xf32> to vector<1x128xf32>
    %34 = arith.mulf %33, %32 : vector<1x128xf32>
    %35 = arith.addf %30, %34 : vector<1x128xf32>
    %36 = vector.broadcast %7 : vector<1x1xf32> to vector<1x128xf32>
    %37 = arith.addf %35, %36 : vector<1x128xf32>
    %38 = arith.addf %26, %37 : vector<1x128xf32>
    %39 = arith.negf %38 : vector<1x128xf32>
    %40 = math.exp %39 : vector<1x128xf32>
    %cst_19 = arith.constant 1.000000e+00 : f32
    %41 = vector.broadcast %cst_19 : f32 to vector<1x128xf32>
    %42 = arith.addf %41, %40 : vector<1x128xf32>
    %43 = arith.divf %41, %42 : vector<1x128xf32>
    %c0_20 = arith.constant 0 : index
    %44 = arith.index_cast %9 : i32 to index
    %45 = vector.load %arg10[%c0_20, %44] : memref<1x384xf32, #tpu.memory_space<vmem>>, vector<1x128xf32>
    tpu.vector_store %arg10[%c0_20, %44], %43 {strides = array<i32>} : memref<1x384xf32, #tpu.memory_space<vmem>>, vector<1x128xf32>,
    %c1_i32 = arith.constant 1 : i32
    %c128_i32_21 = arith.constant 128 : i32
    %46 = arith.muli %c1_i32, %c128_i32_21 : i32
    %47 = tpu.assume_multiple %46, 128 : i32
    %c0_22 = arith.constant 0 : index
    %48 = arith.index_cast %47 : i32 to index
    %49 = vector.load %arg1[%c0_22, %48] : memref<2x384xf32, #tpu.memory_space<vmem>>, vector<2x128xf32>
    %cst_23 = arith.constant dense<0.000000e+00> : vector<32x128xf32>
    %50 = tpu.matmul %0, %49, %cst_23 {dimension_numbers = #tpu.dot_dimension_numbers<[1], [0], [0], [1], [0, 0, 1, 1], [], []>} : vector<32x2xf32>, vector<2x128xf32>, vector<32x128xf32> -> vector<32x128xf32>
    %51 = vector.broadcast %1 : vector<32x1xf32> to vector<32x128xf32>
    %52 = arith.addf %50, %51 : vector<32x128xf32>
    %53 = math.tanh %52 : vector<32x128xf32>
    %cst_24 = arith.constant dense<0.000000e+00> : vector<32x128xf32>
    %54 = tpu.matmul %2, %53, %cst_24 {dimension_numbers = #tpu.dot_dimension_numbers<[1], [0], [0], [1], [0, 0, 1, 1], [], []>} : vector<32x32xf32>, vector<32x128xf32>, vector<32x128xf32> -> vector<32x128xf32>
    %55 = vector.broadcast %3 : vector<32x1xf32> to vector<32x128xf32>
    %56 = arith.addf %54, %55 : vector<32x128xf32>
    %57 = arith.addf %56, %52 : vector<32x128xf32>
    %58 = math.tanh %57 : vector<32x128xf32>
    %59 = arith.addf %53, %58 : vector<32x128xf32>
    %cst_25 = arith.constant dense<0.000000e+00> : vector<1x128xf32>
    %60 = tpu.matmul %4, %59, %cst_25 {dimension_numbers = #tpu.dot_dimension_numbers<[1], [0], [0], [1], [0, 0, 1, 1], [], []>} : vector<1x32xf32>, vector<32x128xf32>, vector<1x128xf32> -> vector<1x128xf32>
    %cst_26 = arith.constant 2.000000e+00 : f32
    %61 = vector.broadcast %cst_26 : f32 to vector<1x1xf32>
    %62 = arith.mulf %61, %5 : vector<1x1xf32>
    %63 = vector.broadcast %62 : vector<1x1xf32> to vector<1x128xf32>
    %64 = arith.addf %60, %63 : vector<1x128xf32>
    %65 = vector.extract_strided_slice %6 {offsets = [0, 0], sizes = [1, 1], strides = [1, 1]} : vector<1x2xf32> to vector<1x1xf32>
    %66 = vector.extract_strided_slice %49 {offsets = [0, 0], sizes = [1, 128], strides = [1, 1]} : vector<2x128xf32> to vector<1x128xf32>
    %67 = vector.broadcast %65 : vector<1x1xf32> to vector<1x128xf32>
    %68 = arith.mulf %67, %66 : vector<1x128xf32>
    %69 = vector.extract_strided_slice %6 {offsets = [0, 1], sizes = [1, 1], strides = [1, 1]} : vector<1x2xf32> to vector<1x1xf32>
    %70 = vector.extract_strided_slice %49 {offsets = [1, 0], sizes = [1, 128], strides = [1, 1]} : vector<2x128xf32> to vector<1x128xf32>
    %71 = vector.broadcast %69 : vector<1x1xf32> to vector<1x128xf32>
    %72 = arith.mulf %71, %70 : vector<1x128xf32>
    %73 = arith.addf %68, %72 : vector<1x128xf32>
    %74 = vector.broadcast %7 : vector<1x1xf32> to vector<1x128xf32>
    %75 = arith.addf %73, %74 : vector<1x128xf32>
    %76 = arith.addf %64, %75 : vector<1x128xf32>
    %77 = arith.negf %76 : vector<1x128xf32>
    %78 = math.exp %77 : vector<1x128xf32>
    %cst_27 = arith.constant 1.000000e+00 : f32
    %79 = vector.broadcast %cst_27 : f32 to vector<1x128xf32>
    %80 = arith.addf %79, %78 : vector<1x128xf32>
    %81 = arith.divf %79, %80 : vector<1x128xf32>
    %c0_28 = arith.constant 0 : index
    %82 = arith.index_cast %47 : i32 to index
    %83 = vector.load %arg10[%c0_28, %82] : memref<1x384xf32, #tpu.memory_space<vmem>>, vector<1x128xf32>
    tpu.vector_store %arg10[%c0_28, %82], %81 {strides = array<i32>} : memref<1x384xf32, #tpu.memory_space<vmem>>, vector<1x128xf32>,
    %c2_i32 = arith.constant 2 : i32
    %c128_i32_29 = arith.constant 128 : i32
    %84 = arith.muli %c2_i32, %c128_i32_29 : i32
    %85 = tpu.assume_multiple %84, 128 : i32
    %c0_30 = arith.constant 0 : index
    %86 = arith.index_cast %85 : i32 to index
    %87 = vector.load %arg1[%c0_30, %86] : memref<2x384xf32, #tpu.memory_space<vmem>>, vector<2x128xf32>
    %cst_31 = arith.constant dense<0.000000e+00> : vector<32x128xf32>
    %88 = tpu.matmul %0, %87, %cst_31 {dimension_numbers = #tpu.dot_dimension_numbers<[1], [0], [0], [1], [0, 0, 1, 1], [], []>} : vector<32x2xf32>, vector<2x128xf32>, vector<32x128xf32> -> vector<32x128xf32>
    %89 = vector.broadcast %1 : vector<32x1xf32> to vector<32x128xf32>
    %90 = arith.addf %88, %89 : vector<32x128xf32>
    %91 = math.tanh %90 : vector<32x128xf32>
    %cst_32 = arith.constant dense<0.000000e+00> : vector<32x128xf32>
    %92 = tpu.matmul %2, %91, %cst_32 {dimension_numbers = #tpu.dot_dimension_numbers<[1], [0], [0], [1], [0, 0, 1, 1], [], []>} : vector<32x32xf32>, vector<32x128xf32>, vector<32x128xf32> -> vector<32x128xf32>
    %93 = vector.broadcast %3 : vector<32x1xf32> to vector<32x128xf32>
    %94 = arith.addf %92, %93 : vector<32x128xf32>
    %95 = arith.addf %94, %90 : vector<32x128xf32>
    %96 = math.tanh %95 : vector<32x128xf32>
    %97 = arith.addf %91, %96 : vector<32x128xf32>
    %cst_33 = arith.constant dense<0.000000e+00> : vector<1x128xf32>
    %98 = tpu.matmul %4, %97, %cst_33 {dimension_numbers = #tpu.dot_dimension_numbers<[1], [0], [0], [1], [0, 0, 1, 1], [], []>} : vector<1x32xf32>, vector<32x128xf32>, vector<1x128xf32> -> vector<1x128xf32>
    %cst_34 = arith.constant 2.000000e+00 : f32
    %99 = vector.broadcast %cst_34 : f32 to vector<1x1xf32>
    %100 = arith.mulf %99, %5 : vector<1x1xf32>
    %101 = vector.broadcast %100 : vector<1x1xf32> to vector<1x128xf32>
    %102 = arith.addf %98, %101 : vector<1x128xf32>
    %103 = vector.extract_strided_slice %6 {offsets = [0, 0], sizes = [1, 1], strides = [1, 1]} : vector<1x2xf32> to vector<1x1xf32>
    %104 = vector.extract_strided_slice %87 {offsets = [0, 0], sizes = [1, 128], strides = [1, 1]} : vector<2x128xf32> to vector<1x128xf32>
    %105 = vector.broadcast %103 : vector<1x1xf32> to vector<1x128xf32>
    %106 = arith.mulf %105, %104 : vector<1x128xf32>
    %107 = vector.extract_strided_slice %6 {offsets = [0, 1], sizes = [1, 1], strides = [1, 1]} : vector<1x2xf32> to vector<1x1xf32>
    %108 = vector.extract_strided_slice %87 {offsets = [1, 0], sizes = [1, 128], strides = [1, 1]} : vector<2x128xf32> to vector<1x128xf32>
    %109 = vector.broadcast %107 : vector<1x1xf32> to vector<1x128xf32>
    %110 = arith.mulf %109, %108 : vector<1x128xf32>
    %111 = arith.addf %106, %110 : vector<1x128xf32>
    %112 = vector.broadcast %7 : vector<1x1xf32> to vector<1x128xf32>
    %113 = arith.addf %111, %112 : vector<1x128xf32>
    %114 = arith.addf %102, %113 : vector<1x128xf32>
    %115 = arith.negf %114 : vector<1x128xf32>
    %116 = math.exp %115 : vector<1x128xf32>
    %cst_35 = arith.constant 1.000000e+00 : f32
    %117 = vector.broadcast %cst_35 : f32 to vector<1x128xf32>
    %118 = arith.addf %117, %116 : vector<1x128xf32>
    %119 = arith.divf %117, %118 : vector<1x128xf32>
    %c0_36 = arith.constant 0 : index
    %120 = arith.index_cast %85 : i32 to index
    %121 = vector.load %arg10[%c0_36, %120] : memref<1x384xf32, #tpu.memory_space<vmem>>, vector<1x128xf32>
    tpu.vector_store %arg10[%c0_36, %120], %119 {strides = array<i32>} : memref<1x384xf32, #tpu.memory_space<vmem>>, vector<1x128xf32>,
    %c3_i32 = arith.constant 3 : i32
    return
  }
  func.func @transform_0(%arg0: i32) -> (i32, i32) {
    %c0_i32 = arith.constant 0 : i32
    %c0_i32_0 = arith.constant 0 : i32
    return %c0_i32, %arg0 : i32, i32
  }
  func.func @transform_1(%arg0: i32) -> (i32, i32) {
    %c0_i32 = arith.constant 0 : i32
    %c0_i32_0 = arith.constant 0 : i32
    %c0_i32_1 = arith.constant 0 : i32
    return %c0_i32, %c0_i32_0 : i32, i32
  }
  func.func @transform_2(%arg0: i32) -> (i32, i32) {
    %c0_i32 = arith.constant 0 : i32
    %c0_i32_0 = arith.constant 0 : i32
    %c0_i32_1 = arith.constant 0 : i32
    return %c0_i32, %c0_i32_0 : i32, i32
  }
  func.func @transform_3(%arg0: i32) -> (i32, i32) {
    %c0_i32 = arith.constant 0 : i32
    %c0_i32_0 = arith.constant 0 : i32
    %c0_i32_1 = arith.constant 0 : i32
    return %c0_i32, %c0_i32_0 : i32, i32
  }
  func.func @transform_4(%arg0: i32) -> (i32, i32) {
    %c0_i32 = arith.constant 0 : i32
    %c0_i32_0 = arith.constant 0 : i32
    %c0_i32_1 = arith.constant 0 : i32
    return %c0_i32, %c0_i32_0 : i32, i32
  }
  func.func @transform_5(%arg0: i32) -> (i32, i32) {
    %c0_i32 = arith.constant 0 : i32
    %c0_i32_0 = arith.constant 0 : i32
    %c0_i32_1 = arith.constant 0 : i32
    return %c0_i32, %c0_i32_0 : i32, i32
  }
  func.func @transform_6(%arg0: i32) -> (i32, i32) {
    %c0_i32 = arith.constant 0 : i32
    %c0_i32_0 = arith.constant 0 : i32
    %c0_i32_1 = arith.constant 0 : i32
    return %c0_i32, %c0_i32_0 : i32, i32
  }
  func.func @transform_7(%arg0: i32) -> (i32, i32) {
    %c0_i32 = arith.constant 0 : i32
    %c0_i32_0 = arith.constant 0 : i32
    %c0_i32_1 = arith.constant 0 : i32
    return %c0_i32, %c0_i32_0 : i32, i32
  }
  func.func @transform_8(%arg0: i32) -> (i32, i32) {
    %c0_i32 = arith.constant 0 : i32
    %c0_i32_0 = arith.constant 0 : i32
    %c0_i32_1 = arith.constant 0 : i32
    return %c0_i32, %c0_i32_0 : i32, i32
  }
  func.func @transform_9(%arg0: i32) -> (i32, i32) {
    %c0_i32 = arith.constant 0 : i32
    %c0_i32_0 = arith.constant 0 : i32
    return %c0_i32, %arg0 : i32, i32
  }
}

</mosaic_0001>

<llo_original>
// kernel: shortnet_forward.1
$region0: #{shortnet_forward.1}
  #allocation0 [shape = 'u32[]', space=smem, size = 0x4, offset = 0x4, fixed_abs, tag = 'smem constant byte address 0x4 - core index']
  #allocation1 [shape = 'u32[72,128]{1,0:T(1,128)}', space=vmem, size = 0x9000, scoped, tag = 'internal scratch']
  #allocation2 [shape = 'f32[1,1]{1,0:T(1,128)S(1)}', space=vmem, size = 0x200, scoped, tag = 'scoped memory for shortnet_forward.1']
  #allocation3 [shape = 'f32[1,1]{1,0:T(1,128)S(1)}', space=vmem, size = 0x200, scoped, tag = 'scoped memory for shortnet_forward.1']
  %s0 = inlined_call_operand.vmem [shape: f32[2,384], index: 0, kind: input, shape index: {}]
  %s1 = inlined_call_operand.vmem [shape: f32[32,2], index: 1, kind: input, shape index: {}]
  %s2 = inlined_call_operand.vmem [shape: f32[32,1], index: 2, kind: input, shape index: {}]
  %s3 = inlined_call_operand.vmem [shape: f32[32,32], index: 3, kind: input, shape index: {}]
  %s4 = inlined_call_operand.vmem [shape: f32[32,1], index: 4, kind: input, shape index: {}]
  %s5 = inlined_call_operand.vmem [shape: f32[1,32], index: 5, kind: input, shape index: {}]
  %s6 = inlined_call_operand.<no memory space> [shape: f32[1,1], index: 6, kind: input, shape index: {}]
  %s7 = inlined_call_operand.vmem [shape: f32[1,2], index: 7, kind: input, shape index: {}]
  %s8 = inlined_call_operand.<no memory space> [shape: f32[1,1], index: 8, kind: input, shape index: {}]
  %s9 = inlined_call_operand.hbm [shape: f32[1,384], index: 9, kind: output, shape index: {}]
  %s10 = sld [smem:[#allocation0]]
  $region46: #{shortnet_forward.1} parent=0
    _
  %s12 = ssub.s32 1, %s10
  %s13 = scalar_select 0, %s12, %s10
  %v14 = vstv %s6
  %15 = vst [vmem:[#allocation2] sm:$0x1] %v14
  %v16 = vstv %s8
  %17 = vst [vmem:[#allocation3] sm:$0x1] %v16
  $region1: #{shortnet_forward.1} parent=0
    #allocation4 [shape = 'u8[1536]{0}', space=vmem, size = 0x800, scoped, tag = 'output window, operand 0, single buffered']
    #allocation5 [shape = 's32[1]{0}', space=sflag, size = 0x4, scoped, tag = 'scoped memory for shortnet_forward.1']
    %18 = vsyncpa [#allocation5], 0
    // Predicated region
    $region2: #{shortnet_forward.1} parent=1 // pred_check
      _
    $region3: #{shortnet_forward.1} parent=1 // pred_check_branch
      %20 = sbr.rel (0) target = $region5
    $region4: #{shortnet_forward.1} parent=1 // pred_region
      _
    $region5: #{shortnet_forward.1} parent=1 // pred_fallthru
      _
    // Predicated region
    $region6: #{shortnet_forward.1} parent=1 // pred_check
      _
    $region7: #{shortnet_forward.1} parent=1 // pred_check_branch
      %22 = sbr.rel (0) target = $region9
    $region8: #{shortnet_forward.1} parent=1 // pred_region
      _
    $region9: #{shortnet_forward.1} parent=1 // pred_fallthru
      _
    // Predicated region
    $region10: #{shortnet_forward.1} parent=1 // pred_check
      _
    $region11: #{shortnet_forward.1} parent=1 // pred_check_branch
      %24 = sbr.rel (0) target = $region13
    $region12: #{shortnet_forward.1} parent=1 // pred_region
      _
    $region13: #{shortnet_forward.1} parent=1 // pred_fallthru
      _
    // Predicated region
    $region14: #{shortnet_forward.1} parent=1 // pred_check
      _
    $region15: #{shortnet_forward.1} parent=1 // pred_check_branch
      %26 = sbr.rel (0) target = $region17
    $region16: #{shortnet_forward.1} parent=1 // pred_region
      _
    $region17: #{shortnet_forward.1} parent=1 // pred_fallthru
      _
    // Predicated region
    $region18: #{shortnet_forward.1} parent=1 // pred_check
      _
    $region19: #{shortnet_forward.1} parent=1 // pred_check_branch
      %28 = sbr.rel (0) target = $region21
    $region20: #{shortnet_forward.1} parent=1 // pred_region
      _
    $region21: #{shortnet_forward.1} parent=1 // pred_fallthru
      _
    // Predicated region
    $region22: #{shortnet_forward.1} parent=1 // pred_check
      _
    $region23: #{shortnet_forward.1} parent=1 // pred_check_branch
      %30 = sbr.rel (0) target = $region25
    $region24: #{shortnet_forward.1} parent=1 // pred_region
      _
    $region25: #{shortnet_forward.1} parent=1 // pred_fallthru
      _
    // Predicated region
    $region26: #{shortnet_forward.1} parent=1 // pred_check
      _
    $region27: #{shortnet_forward.1} parent=1 // pred_check_branch
      %32 = sbr.rel (0) target = $region29
    $region28: #{shortnet_forward.1} parent=1 // pred_region
      _
    $region29: #{shortnet_forward.1} parent=1 // pred_fallthru
      _
    // Predicated region
    $region30: #{shortnet_forward.1} parent=1 // pred_check
      _
    $region31: #{shortnet_forward.1} parent=1 // pred_check_branch
      %34 = sbr.rel (0) target = $region33
    $region32: #{shortnet_forward.1} parent=1 // pred_region
      _
    $region33: #{shortnet_forward.1} parent=1 // pred_fallthru
      _
    // Predicated region
    $region34: #{shortnet_forward.1} parent=1 // pred_check
      _
    $region35: #{shortnet_forward.1} parent=1 // pred_check_branch
      %36 = sbr.rel (0) target = $region37
    $region36: #{shortnet_forward.1} parent=1 // pred_region
      _
    $region37: #{shortnet_forward.1} parent=1 // pred_fallthru
      _
    %v37 = vld [vmem:[%s1] sm:$0xff]
    %v38 = vld [vmem:[%s1 + $0x8] sm:$0xff]
    %v39 = vld [vmem:[%s1 + $0x10] sm:$0xff]
    %v40 = vld [vmem:[%s1 + $0x18] sm:$0xff]
    %v41 = vld [vmem:[%s2] sm:$0xff]
    %v42 = vld [vmem:[%s2 + $0x8] sm:$0xff]
    %v43 = vld [vmem:[%s2 + $0x10] sm:$0xff]
    %v44 = vld [vmem:[%s2 + $0x18] sm:$0xff]
    %v45 = vld [vmem:[%s3] sm:$0xff]
    %v46 = vld [vmem:[%s3 + $0x8] sm:$0xff]
    %v47 = vld [vmem:[%s3 + $0x10] sm:$0xff]
    %v48 = vld [vmem:[%s3 + $0x18] sm:$0xff]
    %v49 = vld [vmem:[%s4] sm:$0xff]
    %v50 = vld [vmem:[%s4 + $0x8] sm:$0xff]
    %v51 = vld [vmem:[%s4 + $0x10] sm:$0xff]
    %v52 = vld [vmem:[%s4 + $0x18] sm:$0xff]
    %v53 = vld [vmem:[%s5] sm:$0x1]
    %v54 = vld [vmem:[#allocation2] sm:$0x1]
    %v55 = vld [vmem:[%s7] sm:$0x1]
    %v56 = vld [vmem:[#allocation3] sm:$0x1]
    %v57 = vld [vmem:[%s0] sm:$0x3]
    %59 = vset.pattern.permute.xlu0 0
    %60 = vperm.xlu0 %59, %v41
    %v61 = vpop.permute.xlu0 %60
    %64 = vset.pattern.permute.xlu0 0
    %65 = vperm.xlu0 %64, %v42
    %v66 = vpop.permute.xlu0 %65
    %69 = vset.pattern.permute.xlu0 0
    %70 = vperm.xlu0 %69, %v43
    %v71 = vpop.permute.xlu0 %70
    %74 = vset.pattern.permute.xlu0 0
    %75 = vperm.xlu0 %74, %v44
    %v76 = vpop.permute.xlu0 %75
    %vm78 = vcmask 15360
    %v80 = vsel %vm78, %v37, 0
    %v83 = vsel %vm78, %v38, 0
    %v86 = vsel %vm78, %v39, 0
    %v89 = vsel %vm78, %v40, 0
    %vm91 = vcmask 1041408
    %v93 = vsel %vm91, %v57, 0
    %95 = vmatpush.msra.mxu0 0.0
    %96 = vmatpush.msra.mxu0 0.0
    %97 = vmatpush.msra.mxu0 0.0
    %98 = vmatpush.msra.mxu0 0.0
    %99 = vmatpush.msra.mxu0 0.0
    %100 = vmatpush.msra.mxu0 0.0
    %101 = vmatpush.msra.mxu0 0.0
    %102 = vmatpush.msra.mxu0 0.0
    %103 = vmatpush.msra.mxu0 0.0
    %104 = vmatpush.msra.mxu0 0.0
    %105 = vmatpush.msra.mxu0 0.0
    %106 = vmatpush.msra.mxu0 0.0
    %107 = vmatpush.msra.mxu0 0.0
    %108 = vmatpush.msra.mxu0 0.0
    %109 = vmatpush.msra.mxu0 0.0
    %110 = vmatpush.msra.mxu0 %v93
    %111 = vmatmul.f32.gmra.mxu0 %v80
    %v112 = vpop.f32.mrf.mxu0
    %v113 = vadd.f32 %v61, %v112
    %114 = vmatmul.f32.gmra.mxu0 %v83
    %v115 = vpop.f32.mrf.mxu0
    %v116 = vadd.f32 %v66, %v115
    %117 = vmatmul.f32.gmra.mxu0 %v86
    %v118 = vpop.f32.mrf.mxu0
    %v119 = vadd.f32 %v71, %v118
    %120 = vmatmul.f32.gmra.mxu0 %v89
    %v121 = vpop.f32.mrf.mxu0
    %v122 = vadd.f32 %v76, %v121
    %123 = vdwg.mxu0
    %v124 = vtanh.pop %v113
    %v125 = vtanh.pop %v116
    %v126 = vtanh.pop %v119
    %v127 = vtanh.pop %v122
    %129 = vset.pattern.permute.xlu0 0
    %130 = vperm.xlu0 %129, %v49
    %v131 = vpop.permute.xlu0 %130
    %134 = vset.pattern.permute.xlu0 0
    %135 = vperm.xlu0 %134, %v50
    %v136 = vpop.permute.xlu0 %135
    %139 = vset.pattern.permute.xlu0 0
    %140 = vperm.xlu0 %139, %v51
    %v141 = vpop.permute.xlu0 %140
    %144 = vset.pattern.permute.xlu0 0
    %145 = vperm.xlu0 %144, %v52
    %v146 = vpop.permute.xlu0 %145
    %vm148 = vcmask 261120
    %v150 = vsel %vm148, %v45, 0
    %v153 = vsel %vm148, %v46, 0
    %v156 = vsel %vm148, %v47, 0
    %v159 = vsel %vm148, %v48, 0
    %161 = vmatpush.msra.mxu0 0.0
    %162 = vmatpush.msra.mxu0 0.0
    %163 = vmatpush.msra.mxu0 0.0
    %164 = vmatpush.msra.mxu0 0.0
    %165 = vmatpush.msra.mxu0 0.0
    %166 = vmatpush.msra.mxu0 0.0
    %167 = vmatpush.msra.mxu0 0.0
    %168 = vmatpush.msra.mxu0 0.0
    %169 = vmatpush.msra.mxu0 0.0
    %170 = vmatpush.msra.mxu0 0.0
    %171 = vmatpush.msra.mxu0 0.0
    %172 = vmatpush.msra.mxu0 0.0
    %173 = vmatpush.msra.mxu0 %v127
    %174 = vmatpush.msra.mxu0 %v126
    %175 = vmatpush.msra.mxu0 %v125
    %176 = vmatpush.msra.mxu0 %v124
    %177 = vmatmul.f32.gmra.mxu0 %v150
    %v178 = vpop.f32.mrf.mxu0
    %v179 = vadd.f32 %v131, %v178
    %180 = vmatmul.f32.gmra.mxu0 %v153
    %v181 = vpop.f32.mrf.mxu0
    %v182 = vadd.f32 %v136, %v181
    %183 = vmatmul.f32.gmra.mxu0 %v156
    %v184 = vpop.f32.mrf.mxu0
    %v185 = vadd.f32 %v141, %v184
    %186 = vmatmul.f32.gmra.mxu0 %v159
    %v187 = vpop.f32.mrf.mxu0
    %v188 = vadd.f32 %v146, %v187
    %189 = vdwg.mxu0
    %v190 = vadd.f32 %v179, %v113
    %v191 = vadd.f32 %v182, %v116
    %v192 = vadd.f32 %v185, %v119
    %v193 = vadd.f32 %v188, %v122
    %v194 = vtanh.pop %v190
    %v195 = vtanh.pop %v191
    %v196 = vtanh.pop %v192
    %v197 = vtanh.pop %v193
    %v198 = vadd.f32 %v124, %v194
    %v199 = vadd.f32 %v125, %v195
    %v200 = vadd.f32 %v126, %v196
    %v201 = vadd.f32 %v127, %v197
    %v202 = vmul.f32 %v54, 2.0
    %204 = vset.pattern.permute.xlu0 0
    %205 = vperm.xlu0 %204, %v202
    %v206 = vpop.permute.xlu0 %205
    %v208 = vperm.slane %v206, 0
    %v210 = vsel %vm148, %v53, 0
    %212 = vmatpush.msra.mxu0 0.0
    %213 = vmatpush.msra.mxu0 0.0
    %214 = vmatpush.msra.mxu0 0.0
    %215 = vmatpush.msra.mxu0 0.0
    %216 = vmatpush.msra.mxu0 0.0
    %217 = vmatpush.msra.mxu0 0.0
    %218 = vmatpush.msra.mxu0 0.0
    %219 = vmatpush.msra.mxu0 0.0
    %220 = vmatpush.msra.mxu0 0.0
    %221 = vmatpush.msra.mxu0 0.0
    %222 = vmatpush.msra.mxu0 0.0
    %223 = vmatpush.msra.mxu0 0.0
    %224 = vmatpush.msra.mxu0 %v201
    %225 = vmatpush.msra.mxu0 %v200
    %226 = vmatpush.msra.mxu0 %v199
    %227 = vmatpush.msra.mxu0 %v198
    %228 = vmatmul.f32.gmra.mxu0 %v210
    %v229 = vpop.f32.mrf.mxu0
    %v230 = vadd.f32 %v208, %v229
    %231 = vdwg.mxu0
    %233 = vset.pattern.permute.xlu0 0
    %234 = vperm.xlu0 %233, %v55
    %v235 = vpop.permute.xlu0 %234
    %v237 = vperm.slane %v235, 0
    %v238 = vmul.f32 %v237, %v57
    %239 = vset.pattern.permute.xlu0 1
    %240 = vperm.xlu0 %239, %v55
    %v241 = vpop.permute.xlu0 %240
    %v243 = vperm.slane %v241, 0
    %v244 = vmul.f32 %v243, %v57
    %v246 = vrot.slane %v244, 7
    %v247 = vrot.slane %v246, 2
    %v249 = vadd.f32 %v238, %v247
    %251 = vset.pattern.permute.xlu0 0
    %252 = vperm.xlu0 %251, %v56
    %v253 = vpop.permute.xlu0 %252
    %v255 = vperm.slane %v253, 0
    %v256 = vadd.f32 %v249, %v255
    %v257 = vadd.f32 %v230, %v256
    %v258 = vxor.u32 %v257, 2147483648
    %v259 = vmul.f32 %v258, 1.442695
    %v260 = vpow.pop %v259
    %v261 = vadd.f32 %v260, 1.0
    %v262 = vrcp.pop %v261
    %v263 = vmul.f32 %v261, %v262
    %v264 = vsub.f32 1.0, %v263
    %v265 = vmul.f32 %v262, %v264
    %v266 = vadd.f32 %v262, %v265
    %vm267 = vweird.f32 %v261
    %vm268 = vweird.f32 %v262
    %vm269 = vmor %vm267, %vm268
    %v270 = vsel %vm269, %v262, %v266
    %v271 = vand.u32 2147483647, %v261
    %vm272 = vcmp.eq.f32.partialorder %v271, 8.507059e+37
    %v273 = vand.u32 %v261, 2147483648
    %v274 = vor.u32 1.1754944e-38, %v273
    %v275 = vsel %vm272, %v274, %v270
    %v276 = vmul.f32 1.0, %v275
    %v277 = vlaneseq
    %vm278 = vcmp.ge.s32.totalorder %v277, 0
    %vm279 = vcmp.lt.s32.totalorder %v277, 128
    %vm280 = vmand %vm278, %vm279
    %281 = vst.msk [vmem:[#allocation4] sm:$0x1] %vm280, %v276
    %s282 = scalar_lea.vmem %s0, 2
    %v283 = vld [vmem:[%s282] sm:$0x3]
    %v285 = vsel %vm91, %v283, 0
    %287 = vmatpush.msra.mxu0 0.0
    %288 = vmatpush.msra.mxu0 0.0
    %289 = vmatpush.msra.mxu0 0.0
    %290 = vmatpush.msra.mxu0 0.0
    %291 = vmatpush.msra.mxu0 0.0
    %292 = vmatpush.msra.mxu0 0.0
    %293 = vmatpush.msra.mxu0 0.0
    %294 = vmatpush.msra.mxu0 0.0
    %295 = vmatpush.msra.mxu0 0.0
    %296 = vmatpush.msra.mxu0 0.0
    %297 = vmatpush.msra.mxu0 0.0
    %298 = vmatpush.msra.mxu0 0.0
    %299 = vmatpush.msra.mxu0 0.0
    %300 = vmatpush.msra.mxu0 0.0
    %301 = vmatpush.msra.mxu0 0.0
    %302 = vmatpush.msra.mxu0 %v285
    %303 = vmatmul.f32.gmra.mxu0 %v80
    %v304 = vpop.f32.mrf.mxu0
    %v305 = vadd.f32 %v61, %v304
    %306 = vmatmul.f32.gmra.mxu0 %v83
    %v307 = vpop.f32.mrf.mxu0
    %v308 = vadd.f32 %v66, %v307
    %309 = vmatmul.f32.gmra.mxu0 %v86
    %v310 = vpop.f32.mrf.mxu0
    %v311 = vadd.f32 %v71, %v310
    %312 = vmatmul.f32.gmra.mxu0 %v89
    %v313 = vpop.f32.mrf.mxu0
    %v314 = vadd.f32 %v76, %v313
    %315 = vdwg.mxu0
    %v316 = vtanh.pop %v305
    %v317 = vtanh.pop %v308
    %v318 = vtanh.pop %v311
    %v319 = vtanh.pop %v314
    %320 = vmatpush.msra.mxu0 0.0
    %321 = vmatpush.msra.mxu0 0.0
    %322 = vmatpush.msra.mxu0 0.0
    %323 = vmatpush.msra.mxu0 0.0
    %324 = vmatpush.msra.mxu0 0.0
    %325 = vmatpush.msra.mxu0 0.0
    %326 = vmatpush.msra.mxu0 0.0
    %327 = vmatpush.msra.mxu0 0.0
    %328 = vmatpush.msra.mxu0 0.0
    %329 = vmatpush.msra.mxu0 0.0
    %330 = vmatpush.msra.mxu0 0.0
    %331 = vmatpush.msra.mxu0 0.0
    %332 = vmatpush.msra.mxu0 %v319
    %333 = vmatpush.msra.mxu0 %v318
    %334 = vmatpush.msra.mxu0 %v317
    %335 = vmatpush.msra.mxu0 %v316
    %336 = vmatmul.f32.gmra.mxu0 %v150
    %v337 = vpop.f32.mrf.mxu0
    %v338 = vadd.f32 %v131, %v337
    %339 = vmatmul.f32.gmra.mxu0 %v153
    %v340 = vpop.f32.mrf.mxu0
    %v341 = vadd.f32 %v136, %v340
    %342 = vmatmul.f32.gmra.mxu0 %v156
    %v343 = vpop.f32.mrf.mxu0
    %v344 = vadd.f32 %v141, %v343
    %345 = vmatmul.f32.gmra.mxu0 %v159
    %v346 = vpop.f32.mrf.mxu0
    %v347 = vadd.f32 %v146, %v346
    %348 = vdwg.mxu0
    %v349 = vadd.f32 %v338, %v305
    %v350 = vadd.f32 %v341, %v308
    %v351 = vadd.f32 %v344, %v311
    %v352 = vadd.f32 %v347, %v314
    %v353 = vtanh.pop %v349
    %v354 = vtanh.pop %v350
    %v355 = vtanh.pop %v351
    %v356 = vtanh.pop %v352
    %v357 = vadd.f32 %v316, %v353
    %v358 = vadd.f32 %v317, %v354
    %v359 = vadd.f32 %v318, %v355
    %v360 = vadd.f32 %v319, %v356
    %361 = vmatpush.msra.mxu0 0.0
    %362 = vmatpush.msra.mxu0 0.0
    %363 = vmatpush.msra.mxu0 0.0
    %364 = vmatpush.msra.mxu0 0.0
    %365 = vmatpush.msra.mxu0 0.0
    %366 = vmatpush.msra.mxu0 0.0
    %367 = vmatpush.msra.mxu0 0.0
    %368 = vmatpush.msra.mxu0 0.0
    %369 = vmatpush.msra.mxu0 0.0
    %370 = vmatpush.msra.mxu0 0.0
    %371 = vmatpush.msra.mxu0 0.0
    %372 = vmatpush.msra.mxu0 0.0
    %373 = vmatpush.msra.mxu0 %v360
    %374 = vmatpush.msra.mxu0 %v359
    %375 = vmatpush.msra.mxu0 %v358
    %376 = vmatpush.msra.mxu0 %v357
    %377 = vmatmul.f32.gmra.mxu0 %v210
    %v378 = vpop.f32.mrf.mxu0
    %v379 = vadd.f32 %v208, %v378
    %380 = vdwg.mxu0
    %v381 = vmul.f32 %v237, %v283
    %v382 = vmul.f32 %v243, %v283
    %v384 = vrot.slane %v382, 7
    %v385 = vrot.slane %v384, 2
    %v387 = vadd.f32 %v381, %v385
    %v388 = vadd.f32 %v387, %v255
    %v389 = vadd.f32 %v379, %v388
    %v390 = vxor.u32 %v389, 2147483648
    %v391 = vmul.f32 %v390, 1.442695
    %v392 = vpow.pop %v391
    %v393 = vadd.f32 %v392, 1.0
    %v394 = vrcp.pop %v393
    %v395 = vmul.f32 %v393, %v394
    %v396 = vsub.f32 1.0, %v395
    %v397 = vmul.f32 %v394, %v396
    %v398 = vadd.f32 %v394, %v397
    %vm399 = vweird.f32 %v393
    %vm400 = vweird.f32 %v394
    %vm401 = vmor %vm399, %vm400
    %v402 = vsel %vm401, %v394, %v398
    %v403 = vand.u32 2147483647, %v393
    %vm404 = vcmp.eq.f32.partialorder %v403, 8.507059e+37
    %v405 = vand.u32 %v393, 2147483648
    %v406 = vor.u32 1.1754944e-38, %v405
    %v407 = vsel %vm404, %v406, %v402
    %v408 = vmul.f32 1.0, %v407
    %s409 = scalar_lea.vmem [#allocation4], 1
    %410 = vst.msk [vmem:[%s409] sm:$0x1] %vm280, %v408
    %s411 = scalar_lea.vmem %s0, 4
    %v412 = vld [vmem:[%s411] sm:$0x3]
    %v414 = vsel %vm91, %v412, 0
    %416 = vmatpush.msra.mxu0 0.0
    %417 = vmatpush.msra.mxu0 0.0
    %418 = vmatpush.msra.mxu0 0.0
    %419 = vmatpush.msra.mxu0 0.0
    %420 = vmatpush.msra.mxu0 0.0
    %421 = vmatpush.msra.mxu0 0.0
    %422 = vmatpush.msra.mxu0 0.0
    %423 = vmatpush.msra.mxu0 0.0
    %424 = vmatpush.msra.mxu0 0.0
    %425 = vmatpush.msra.mxu0 0.0
    %426 = vmatpush.msra.mxu0 0.0
    %427 = vmatpush.msra.mxu0 0.0
    %428 = vmatpush.msra.mxu0 0.0
    %429 = vmatpush.msra.mxu0 0.0
    %430 = vmatpush.msra.mxu0 0.0
    %431 = vmatpush.msra.mxu0 %v414
    %432 = vmatmul.f32.gmra.mxu0 %v80
    %v433 = vpop.f32.mrf.mxu0
    %v434 = vadd.f32 %v61, %v433
    %435 = vmatmul.f32.gmra.mxu0 %v83
    %v436 = vpop.f32.mrf.mxu0
    %v437 = vadd.f32 %v66, %v436
    %438 = vmatmul.f32.gmra.mxu0 %v86
    %v439 = vpop.f32.mrf.mxu0
    %v440 = vadd.f32 %v71, %v439
    %441 = vmatmul.f32.gmra.mxu0 %v89
    %v442 = vpop.f32.mrf.mxu0
    %v443 = vadd.f32 %v76, %v442
    %444 = vdwg.mxu0
    %v445 = vtanh.pop %v434
    %v446 = vtanh.pop %v437
    %v447 = vtanh.pop %v440
    %v448 = vtanh.pop %v443
    %449 = vmatpush.msra.mxu0 0.0
    %450 = vmatpush.msra.mxu0 0.0
    %451 = vmatpush.msra.mxu0 0.0
    %452 = vmatpush.msra.mxu0 0.0
    %453 = vmatpush.msra.mxu0 0.0
    %454 = vmatpush.msra.mxu0 0.0
    %455 = vmatpush.msra.mxu0 0.0
    %456 = vmatpush.msra.mxu0 0.0
    %457 = vmatpush.msra.mxu0 0.0
    %458 = vmatpush.msra.mxu0 0.0
    %459 = vmatpush.msra.mxu0 0.0
    %460 = vmatpush.msra.mxu0 0.0
    %461 = vmatpush.msra.mxu0 %v448
    %462 = vmatpush.msra.mxu0 %v447
    %463 = vmatpush.msra.mxu0 %v446
    %464 = vmatpush.msra.mxu0 %v445
    %465 = vmatmul.f32.gmra.mxu0 %v150
    %v466 = vpop.f32.mrf.mxu0
    %v467 = vadd.f32 %v131, %v466
    %468 = vmatmul.f32.gmra.mxu0 %v153
    %v469 = vpop.f32.mrf.mxu0
    %v470 = vadd.f32 %v136, %v469
    %471 = vmatmul.f32.gmra.mxu0 %v156
    %v472 = vpop.f32.mrf.mxu0
    %v473 = vadd.f32 %v141, %v472
    %474 = vmatmul.f32.gmra.mxu0 %v159
    %v475 = vpop.f32.mrf.mxu0
    %v476 = vadd.f32 %v146, %v475
    %477 = vdwg.mxu0
    %v478 = vadd.f32 %v467, %v434
    %v479 = vadd.f32 %v470, %v437
    %v480 = vadd.f32 %v473, %v440
    %v481 = vadd.f32 %v476, %v443
    %v482 = vtanh.pop %v478
    %v483 = vtanh.pop %v479
    %v484 = vtanh.pop %v480
    %v485 = vtanh.pop %v481
    %v486 = vadd.f32 %v445, %v482
    %v487 = vadd.f32 %v446, %v483
    %v488 = vadd.f32 %v447, %v484
    %v489 = vadd.f32 %v448, %v485
    %490 = vmatpush.msra.mxu0 0.0
    %491 = vmatpush.msra.mxu0 0.0
    %492 = vmatpush.msra.mxu0 0.0
    %493 = vmatpush.msra.mxu0 0.0
    %494 = vmatpush.msra.mxu0 0.0
    %495 = vmatpush.msra.mxu0 0.0
    %496 = vmatpush.msra.mxu0 0.0
    %497 = vmatpush.msra.mxu0 0.0
    %498 = vmatpush.msra.mxu0 0.0
    %499 = vmatpush.msra.mxu0 0.0
    %500 = vmatpush.msra.mxu0 0.0
    %501 = vmatpush.msra.mxu0 0.0
    %502 = vmatpush.msra.mxu0 %v489
    %503 = vmatpush.msra.mxu0 %v488
    %504 = vmatpush.msra.mxu0 %v487
    %505 = vmatpush.msra.mxu0 %v486
    %506 = vmatmul.f32.gmra.mxu0 %v210
    %v507 = vpop.f32.mrf.mxu0
    %v508 = vadd.f32 %v208, %v507
    %509 = vdwg.mxu0
    %v510 = vmul.f32 %v237, %v412
    %v511 = vmul.f32 %v243, %v412
    %v513 = vrot.slane %v511, 7
    %v514 = vrot.slane %v513, 2
    %v516 = vadd.f32 %v510, %v514
    %v517 = vadd.f32 %v516, %v255
    %v518 = vadd.f32 %v508, %v517
    %v519 = vxor.u32 %v518, 2147483648
    %v520 = vmul.f32 %v519, 1.442695
    %v521 = vpow.pop %v520
    %v522 = vadd.f32 %v521, 1.0
    %v523 = vrcp.pop %v522
    %v524 = vmul.f32 %v522, %v523
    %v525 = vsub.f32 1.0, %v524
    %v526 = vmul.f32 %v523, %v525
    %v527 = vadd.f32 %v523, %v526
    %vm528 = vweird.f32 %v522
    %vm529 = vweird.f32 %v523
    %vm530 = vmor %vm528, %vm529
    %v531 = vsel %vm530, %v523, %v527
    %v532 = vand.u32 2147483647, %v522
    %vm533 = vcmp.eq.f32.partialorder %v532, 8.507059e+37
    %v534 = vand.u32 %v522, 2147483648
    %v535 = vor.u32 1.1754944e-38, %v534
    %v536 = vsel %vm533, %v535, %v531
    %v537 = vmul.f32 1.0, %v536
    %s538 = scalar_lea.vmem [#allocation4], 2
    %539 = vst.msk [vmem:[%s538] sm:$0x1] %vm280, %v537
    // Predicated region
    $region38: #{shortnet_forward.1} parent=1 // pred_check
      _
    $region39: #{shortnet_forward.1} parent=1 // pred_check_branch
      %541 = sbr.rel (0) target = $region41
    $region40: #{shortnet_forward.1} parent=1 // pred_region
      %543 = vsyncadd [#allocation5], 0
      %s545 = sshll.u32 [#allocation4], 4
      %s546 = int_to_ptr.vmem [resolvable:$true] %s545
      %s547 = sshll.u32 %s9, 4
      %s548 = int_to_ptr.hbm [resolvable:$true] %s547
      %550 = dma.vmem_to_hbm [thread:$0]  %s546, 48, %s548, [#allocation5]
    $region41: #{shortnet_forward.1} parent=1 // pred_fallthru
      _
    // Predicated region
    $region42: #{shortnet_forward.1} parent=1 // pred_check
      _
    $region43: #{shortnet_forward.1} parent=1 // pred_check_branch
      %552 = sbr.rel (0) target = $region45
    $region44: #{shortnet_forward.1} parent=1 // pred_region
      %554 = dma.done [#allocation5], 48
    $region45: #{shortnet_forward.1} parent=1 // pred_fallthru
      _
    %555 = vsyncpa [#allocation5], 1

</llo_original>
